<compile_context>
chip_gen: v6e
topology: v6e:2x2x1
jax: 0.10.0
libtpu: 0.0.40
codegen_flags: <defaults>
</compile_context>

<pallas_src>
import jax
import jax.numpy as jnp
from jax.experimental import pallas as pl
from jax.experimental.pallas import tpu as pltpu


# ----------------------------------------------------------------------------
# Generation-specific tiling defaults (roofline-driven):
#   v5e : 512 x 1024 x 2048  -> already MXU-bound (~341 flop/byte vs ~240 roofline)
#   v6e : 2048 x 2048 x 1024 -> lifts intensity above the ~650 flop/byte roofline
#                               (~48 MiB double-buffered, limit raised to 96 MiB)
#   v7x : 1024 x 1024 x 2048 -> ~24 MiB footprint, well under the 64 MiB per-TC
#                               VMEM with compiler headroom (limit 52 MiB)
# ----------------------------------------------------------------------------
_TILE_DEFAULTS = {
    "v5": dict(tile_m=512,  tile_n=1024, tile_k=2048, vmem=48 * 1024 * 1024),
    "v6": dict(tile_m=2048, tile_n=2048, tile_k=1024, vmem=96 * 1024 * 1024),
    "v7": dict(tile_m=1024, tile_n=1024, tile_k=2048, vmem=52 * 1024 * 1024),
}

_M_BUCKET = 256   # bf16 packs 16 rows/vreg; 256 matches v6e/v7x 256x256 MXU tiles
_M_FULL_CAP = 2048  # up to this, use a single full-M tile (weight streamed once)


def _tpu_generation():
    try:
        kind = jax.devices()[0].device_kind.lower()
    except Exception:
        return "v5"
    if "tpu7" in kind or "v7" in kind or "7x" in kind:
        return "v7"
    if "v6" in kind or "6e" in kind:
        return "v6"
    if "v5" in kind or "5e" in kind or "5p" in kind:
        return "v5"
    return "v5"  # unknown -> smallest / safest VMEM footprint


def _round_up(v, m):
    return ((v + m - 1) // m) * m


def _plan_k(K, tile_k):
    """Return (padded_K, tk).  K <= tile_k -> single full-K block (no padding);
    otherwise pad K up to a multiple of tile_k so every K block is full.
    Zero padding the contraction axis is numerically exact."""
    if K <= tile_k:
        return K, K
    return _round_up(K, tile_k), tile_k


def _pick_m_block(Mp, tile_m):
    """Prefer the full (bucketed) M so the dominant (K x N) weight is read from
    HBM exactly once; fall back to the generation default for very large M."""
    if Mp <= _M_FULL_CAP:
        return Mp
    return tile_m


def _pick_n_block(N, tile_n):
    return N if N <= tile_n else tile_n


# ----------------------------------------------------------------------------
# Pallas kernel: output-head projection  out[f32] = x @ W_t
# grid = (M tiles, N tiles, K tiles) — K innermost ("arbitrary"), M/N "parallel"
# x_ref : (TM, TK)  activation tile (bf16 / f32)
# w_ref : (TK, TN)  pre-transposed weight tile (hidden, vocab layout)
# o_ref : (TM, TN)  float32 logits tile — resident across K, used as accumulator
# ----------------------------------------------------------------------------
def _proj_kernel(x_ref, w_ref, o_ref):
    prod = jnp.dot(x_ref[...], w_ref[...], preferred_element_type=jnp.float32)

    @pl.when(pl.program_id(2) == 0)
    def _():
        o_ref[...] = prod            # first K step: direct store (no zero pass)

    @pl.when(pl.program_id(2) > 0)
    def _():
        o_ref[...] += prod           # later K steps: accumulate in-place (f32)


def linear_head(x, w_t, *, tiles=None):
    """Compute (x @ w_t).astype(float32) with a Pallas TPU kernel.

    x   : (M, K)   activations (bf16 / f32)
    w_t : (Kw, N)  weight, already transposed from torch Linear (N, K) layout;
                   Kw may already be padded (Kw >= K) by the owning layer.
    returns (M, N) float32
    """
    M, K = x.shape
    Kw, N = w_t.shape
    assert Kw >= K

    cfg = tiles or _TILE_DEFAULTS[_tpu_generation()]
    tile_m, tile_n, tile_k = cfg["tile_m"], cfg["tile_n"], cfg["tile_k"]
    vmem_limit = cfg["vmem"]

    # --- K plan: pad instead of shrinking tk / monolithic-K fallbacks --------
    Kp, tk = _plan_k(Kw, tile_k)
    if Kp != Kw:
        w_t = jnp.pad(w_t, ((0, Kp - Kw), (0, 0)))

    # --- M plan: bucket to 256 (alignment + shared compile shapes across
    #     per-adapter batch slices), pad x once for both M and K ---------------
    Mp = _round_up(max(M, 1), _M_BUCKET)
    if (Mp, Kp) != (M, K):
        x = jnp.pad(x, ((0, Mp - M), (0, Kp - K)))

    tm = _pick_m_block(Mp, tile_m)
    tn = _pick_n_block(N, tile_n)

    grid = (pl.cdiv(Mp, tm), pl.cdiv(N, tn), pl.cdiv(Kp, tk))
    # NOTE(v7x megacore): with a full-M tile the M grid axis is 1; the 2-TC
    # split then comes from the N axis, which has >= 2 tiles for vocab-sized N.

    x_bytes = jnp.dtype(x.dtype).itemsize
    w_bytes = jnp.dtype(w_t.dtype).itemsize
    cost = pl.CostEstimate(
        flops=2 * Mp * N * Kp,
        transcendentals=0,
        bytes_accessed=Mp * Kp * x_bytes + N * Kp * w_bytes + Mp * N * 4,
    )

    out = pl.pallas_call(
        _proj_kernel,
        out_shape=jax.ShapeDtypeStruct((Mp, N), jnp.float32),
        grid_spec=pltpu.PrefetchScalarGridSpec(
            num_scalar_prefetch=0,
            grid=grid,
            in_specs=[
                pl.BlockSpec((tm, tk), lambda i, j, k: (i, k)),  # activations
                pl.BlockSpec((tk, tn), lambda i, j, k: (k, j)),  # weights (K,N)
            ],
            out_specs=pl.BlockSpec((tm, tn), lambda i, j, k: (i, j)),
        ),
        compiler_params=pltpu.CompilerParams(
            dimension_semantics=("parallel", "parallel", "arbitrary"),
            vmem_limit_bytes=vmem_limit,
        ),
        cost_estimate=cost,
    )(x, w_t)
    return out[:M]


# ----------------------------------------------------------------------------
# Output heads (JAX analogues of CasualOutputLayer / ClassificationOutputLayer)
# ----------------------------------------------------------------------------
class CasualOutputLayer:
    def __init__(self, vocab_size, lm_head_weight):
        self.vocab_size_ = vocab_size
        w_t = jnp.asarray(lm_head_weight).T          # (hidden, vocab)
        self.hidden_ = w_t.shape[0]
        # One-time setup: pre-pad K to the kernel's K plan so the hot path
        # never re-pads the (large) weight per forward call.
        tile_k = _TILE_DEFAULTS[_tpu_generation()]["tile_k"]
        Kp, _ = _plan_k(self.hidden_, tile_k)
        if Kp != self.hidden_:
            w_t = jnp.pad(w_t, ((0, Kp - self.hidden_), (0, 0)))
        self.w_t_ = w_t

    def forward(self, data):
        # data: (b, s, h) -> logits (b, s, vocab) float32 == lm_head_(data).float()
        b, s, h = data.shape
        flat = data.reshape(b * s, h)
        logits = linear_head(flat, self.w_t_)
        return logits.reshape(b, s, self.vocab_size_)


class ClassificationOutputLayer:
    def __init__(self, num_labels, score_weight):
        self.num_labels_ = num_labels
        # (num_labels, hidden) -> (hidden, num_labels), float32
        self.w_t_ = jnp.asarray(score_weight, dtype=jnp.float32).T

    def forward(self, data):
        # Tiny-N head (num_labels ~ 4): a Pallas tile would be lane-masked and
        # MXU-padded, so route through plain XLA (data.to(float32) @ W.T).
        b, s, h = data.shape
        flat = data.reshape(b * s, h).astype(jnp.float32)
        logits = jnp.dot(flat, self.w_t_, preferred_element_type=jnp.float32)
        return logits.reshape(b, s, self.num_labels_)


class OutputLayer:
    """Per-adapter batch-sliced output heads (mirror of OutputLayer.forward).
    linear_head buckets each slice's M to a multiple of 256, so differently
    sized adapter slices share compiled kernel shapes."""

    def __init__(self):
        self.layers_ = {}

    def forward(self, data, lora_batch_data_config_):
        outputs = []
        for adapter_name, start_idx, end_idx in lora_batch_data_config_:
            assert adapter_name != "" and adapter_name in self.layers_
            layer = self.layers_[adapter_name]
            outputs.append(
                dict(
                    adapter_name=adapter_name,
                    logits=layer.forward(data[start_idx:end_idx]),
                    batch_start_idx_=start_idx,
                    batch_end_idx_=end_idx,
                )
            )
        return outputs


class OutputSequentialWrapper:
    """JAX analogue of the PyTorch OutputSequentialWrapper (the spec module)."""

    def __init__(self, module):
        self.wrapper_module_ = module

    def name(self):
        return type(self.wrapper_module_).__name__

    def forward(self, input):
        output = self.wrapper_module_.forward(input[0], input[2])
        return (output,) + input[1:]


# ----------------------------------------------------------------------------
# LLMModel (synthetic): embedding -> (decoder stack) -> OutputSequentialWrapper
# ----------------------------------------------------------------------------
class LLMModel:
    def __init__(self, vocab_size, hidden, num_labels, key, dtype=jnp.bfloat16):
        self.vocab_size_ = vocab_size
        self.dtype_ = dtype
        k0, k1, k2 = jax.random.split(key, 3)
        # deterministic synthetic parameters (no checkpoint load)
        self.embed_ = (jax.random.normal(k0, (vocab_size, hidden)) * 0.02).astype(dtype)
        lm_head_w = (jax.random.normal(k1, (vocab_size, hidden)) * 0.02).astype(dtype)
        score_w = (
            jax.random.normal(k2, (num_labels, hidden)) * (2.0 / hidden) ** 0.5
        ).astype(jnp.float32)

        output_layer = OutputLayer()
        output_layer.layers_["casual"] = CasualOutputLayer(vocab_size, lm_head_w)
        output_layer.layers_["classify"] = ClassificationOutputLayer(num_labels, score_w)
        self.output_wrapper_ = OutputSequentialWrapper(output_layer)

    def forward(self, tokens, lora_batch_data_config_):
        tokens = tokens.astype(jnp.int32)
        # base model: token embedding (glue / plain JAX)
        hidden_states = jnp.take(self.embed_, tokens, axis=0)  # (B, S, H), bf16
        # TODO(synk): the LLMForCausalLM decoder stack (attention/MLP/LoRA-MoE
        # layers of seq_module_) is not defined in the provided snippet; the
        # sequential pass is an identity here.
        data = hidden_states
        # OutputSequentialWrapper.forward((data, router_outputs, input_args))
        wrapped = self.output_wrapper_.forward((data, None, lora_batch_data_config_))
        return wrapped[0]


# ----------------------------------------------------------------------------
if __name__ == "__main__":
    key = jax.random.PRNGKey(0)
    kp, kt = jax.random.split(key)

    batch, seq, hidden = 2, 8, 32
    vocab, num_labels = 256, 4

    model = LLMModel(vocab, hidden, num_labels, kp)

    tokens = jax.random.randint(kt, (batch, seq), 0, vocab, dtype=jnp.int32)

    # two adapters splitting the batch, like MultiLoraBatchData.lora_batch_data_config_
    lora_batch_config = [
        ("casual", 0, 1),    # rows [0:1] -> causal LM head (Pallas kernel)
        ("classify", 1, 2),  # rows [1:2] -> classification head (plain XLA)
    ]

    outputs = model.forward(tokens, lora_batch_config)

    for out in outputs:
        jax.block_until_ready(out["logits"])

    # sanity: shapes / dtypes match the PyTorch semantics
    assert outputs[0]["logits"].shape == (1, seq, vocab)
    assert outputs[0]["logits"].dtype == jnp.float32
    assert outputs[1]["logits"].shape == (1, seq, num_labels)
    assert outputs[1]["logits"].dtype == jnp.float32

    # numeric check of the Pallas LM head against a plain-JAX reference
    casual = model.output_wrapper_.wrapper_module_.layers_["casual"]
    w_ref = jnp.asarray(casual.w_t_)[:hidden, :].astype(jnp.float32)  # drop K padding
    flat = jnp.take(model.embed_, tokens[0:1].reshape(-1), axis=0).astype(jnp.float32)
    ref = jnp.dot(flat, w_ref)
    got = outputs[0]["logits"].reshape(seq, vocab)
    assert jnp.max(jnp.abs(got - ref)) < 1e-2

    print("KERNEL_OK")
</pallas_src>

<mosaic_0001>
module attributes {stable_mosaic.version = 11 : i64} {
  func.func @_proj_kernel(%arg0: i32, %arg1: i32, %arg2: i32, %arg3: memref<256x32xbf16, #tpu.memory_space<vmem>>, %arg4: memref<32x256xbf16, #tpu.memory_space<vmem>>, %arg5: memref<256x256xf32, #tpu.memory_space<vmem>>) attributes {dimension_semantics = [#tpu.dimension_semantics<parallel>, #tpu.dimension_semantics<parallel>, #tpu.dimension_semantics<arbitrary>], iteration_bounds = array<i64: 1, 1, 1>, scalar_prefetch = 0 : i64, scratch_operands = 0 : i64, tpu.core_type = #tpu.core_type<tc>, window_params = [{transform_indices = @transform_0, window_bounds = array<i64: 256, 32>}, {transform_indices = @transform_1, window_bounds = array<i64: 32, 256>}, {transform_indices = @transform_2, window_bounds = array<i64: 256, 256>}]} {
    %c0 = arith.constant 0 : index
    %c0_0 = arith.constant 0 : index
    %0 = vector.load %arg3[%c0, %c0_0] : memref<256x32xbf16, #tpu.memory_space<vmem>>, vector<256x32xbf16>
    %c0_1 = arith.constant 0 : index
    %c0_2 = arith.constant 0 : index
    %1 = vector.load %arg4[%c0_1, %c0_2] : memref<32x256xbf16, #tpu.memory_space<vmem>>, vector<32x256xbf16>
    %cst = arith.constant dense<0.000000e+00> : vector<256x256xf32>
    %2 = tpu.matmul %0, %1, %cst {dimension_numbers = #tpu.dot_dimension_numbers<[1], [0], [0], [1], [0, 0, 1, 1], [], []>} : vector<256x32xbf16>, vector<32x256xbf16>, vector<256x256xf32> -> vector<256x256xf32>
    %c0_i32 = arith.constant 0 : i32
    %3 = arith.cmpi eq, %arg2, %c0_i32 : i32
    %4 = arith.extui %3 : i1 to i32
    %c0_i32_3 = arith.constant 0 : i32
    %5 = arith.cmpi ne, %4, %c0_i32_3 : i32
    scf.if %5 {
      %c0_6 = arith.constant 0 : index
      %c0_7 = arith.constant 0 : index
      %9 = vector.load %arg5[%c0_6, %c0_7] : memref<256x256xf32, #tpu.memory_space<vmem>>, vector<256x256xf32>
      tpu.vector_store %arg5[%c0_6, %c0_7], %2 {strides = array<i32>} : memref<256x256xf32, #tpu.memory_space<vmem>>, vector<256x256xf32>,
    } else {
    }
    %c0_i32_4 = arith.constant 0 : i32
    %6 = arith.cmpi sgt, %arg2, %c0_i32_4 : i32
    %7 = arith.extui %6 : i1 to i32
    %c0_i32_5 = arith.constant 0 : i32
    %8 = arith.cmpi ne, %7, %c0_i32_5 : i32
    scf.if %8 {
      %c0_6 = arith.constant 0 : index
      %c0_7 = arith.constant 0 : index
      %9 = vector.load %arg5[%c0_6, %c0_7] : memref<256x256xf32, #tpu.memory_space<vmem>>, vector<256x256xf32>
      %10 = arith.addf %9, %2 : vector<256x256xf32>
      %c0_8 = arith.constant 0 : index
      %c0_9 = arith.constant 0 : index
      %11 = vector.load %arg5[%c0_8, %c0_9] : memref<256x256xf32, #tpu.memory_space<vmem>>, vector<256x256xf32>
      tpu.vector_store %arg5[%c0_8, %c0_9], %10 {strides = array<i32>} : memref<256x256xf32, #tpu.memory_space<vmem>>, vector<256x256xf32>,
    } else {
    }
    return
  }
  func.func @transform_0(%arg0: i32, %arg1: i32, %arg2: i32) -> (i32, i32) {
    %c0_i32 = arith.constant 0 : i32
    return %arg0, %arg2 : i32, i32
  }
  func.func @transform_1(%arg0: i32, %arg1: i32, %arg2: i32) -> (i32, i32) {
    %c0_i32 = arith.constant 0 : i32
    return %arg2, %arg1 : i32, i32
  }
  func.func @transform_2(%arg0: i32, %arg1: i32, %arg2: i32) -> (i32, i32) {
    %c0_i32 = arith.constant 0 : i32
    return %arg0, %arg1 : i32, i32
  }
}

</mosaic_0001>

<llo_original>
// kernel: tpu_custom_call.1
$region0: #{tpu_custom_call.1}
  #allocation0 [shape = 'u32[]', space=smem, size = 0x4, offset = 0x4, fixed_abs, tag = 'smem constant byte address 0x4 - core index']
  #allocation1 [shape = 'u32[144,128]{1,0:T(1,128)}', space=vmem, size = 0x12000, scoped, tag = 'internal scratch']
  %s0 = inlined_call_operand.vmem [shape: bf16[256,32], index: 0, kind: input, shape index: {}]
  %s1 = inlined_call_operand.vmem [shape: bf16[32,256], index: 1, kind: input, shape index: {}]
  %s2 = inlined_call_operand.hbm [shape: f32[256,256], index: 2, kind: output, shape index: {}]
  %s3 = sld [smem:[#allocation0]]
  $region26: #{tpu_custom_call.1} parent=0
    _
  %s5 = ssub.s32 1, %s3
  %s6 = scalar_select 0, %s5, %s3
  $region1: #{tpu_custom_call.1} parent=0
    #allocation2 [shape = 'u8[262144]{0}', space=vmem, size = 0x40000, scoped, tag = 'output window, operand 0, single buffered']
    #allocation3 [shape = 's32[1]{0}', space=sflag, size = 0x4, scoped, tag = 'scoped memory for tpu_custom_call.1']
    %7 = vsyncpa [#allocation3], 0
    // Predicated region
    $region2: #{tpu_custom_call.1} parent=1 // pred_check
      _
    $region3: #{tpu_custom_call.1} parent=1 // pred_check_branch
      %9 = sbr.rel (0) target = $region5
    $region4: #{tpu_custom_call.1} parent=1 // pred_region
      _
    $region5: #{tpu_custom_call.1} parent=1 // pred_fallthru
      _
    // Predicated region
    $region6: #{tpu_custom_call.1} parent=1 // pred_check
      _
    $region7: #{tpu_custom_call.1} parent=1 // pred_check_branch
      %11 = sbr.rel (0) target = $region9
    $region8: #{tpu_custom_call.1} parent=1 // pred_region
      _
    $region9: #{tpu_custom_call.1} parent=1 // pred_fallthru
      _
    %v13 = vld [vmem:[%s0] sm:$0xf]
    %v14 = vld [vmem:[%s0 + $0x4] sm:$0xf]
    %v15 = vld [vmem:[%s0 + $0x8] sm:$0xf]
    %v16 = vld [vmem:[%s0 + $0xc] sm:$0xf]
    %v17 = vld [vmem:[%s0 + $0x10] sm:$0xf]
    %v18 = vld [vmem:[%s0 + $0x14] sm:$0xf]
    %v19 = vld [vmem:[%s0 + $0x18] sm:$0xf]
    %v20 = vld [vmem:[%s0 + $0x1c] sm:$0xf]
    %v21 = vld [vmem:[%s0 + $0x20] sm:$0xf]
    %v22 = vld [vmem:[%s0 + $0x24] sm:$0xf]
    %v23 = vld [vmem:[%s0 + $0x28] sm:$0xf]
    %v24 = vld [vmem:[%s0 + $0x2c] sm:$0xf]
    %v25 = vld [vmem:[%s0 + $0x30] sm:$0xf]
    %v26 = vld [vmem:[%s0 + $0x34] sm:$0xf]
    %v27 = vld [vmem:[%s0 + $0x38] sm:$0xf]
    %v28 = vld [vmem:[%s0 + $0x3c] sm:$0xf]
    %v29 = vld [vmem:[%s0 + $0x40] sm:$0xf]
    %v30 = vld [vmem:[%s0 + $0x44] sm:$0xf]
    %v31 = vld [vmem:[%s0 + $0x48] sm:$0xf]
    %v32 = vld [vmem:[%s0 + $0x4c] sm:$0xf]
    %v33 = vld [vmem:[%s0 + $0x50] sm:$0xf]
    %v34 = vld [vmem:[%s0 + $0x54] sm:$0xf]
    %v35 = vld [vmem:[%s0 + $0x58] sm:$0xf]
    %v36 = vld [vmem:[%s0 + $0x5c] sm:$0xf]
    %v37 = vld [vmem:[%s0 + $0x60] sm:$0xf]
    %v38 = vld [vmem:[%s0 + $0x64] sm:$0xf]
    %v39 = vld [vmem:[%s0 + $0x68] sm:$0xf]
    %v40 = vld [vmem:[%s0 + $0x6c] sm:$0xf]
    %v41 = vld [vmem:[%s0 + $0x70] sm:$0xf]
    %v42 = vld [vmem:[%s0 + $0x74] sm:$0xf]
    %v43 = vld [vmem:[%s0 + $0x78] sm:$0xf]
    %v44 = vld [vmem:[%s0 + $0x7c] sm:$0xf]
    %v45 = vld [vmem:[%s1] sm:$0xff]
    %v46 = vld [vmem:[%s1 + $0x8] sm:$0xff]
    %v47 = vld [vmem:[%s1 + $0x10] sm:$0xff]
    %v48 = vld [vmem:[%s1 + $0x18] sm:$0xff]
    %v81 = vunpack.c.l.b16 %v13
    %v82 = vunpack.c.l.b16 %v14
    %v83 = vunpack.c.l.b16 %v15
    %v84 = vunpack.c.l.b16 %v16
    %v85 = vunpack.c.l.b16 %v17
    %v86 = vunpack.c.l.b16 %v18
    %v87 = vunpack.c.l.b16 %v19
    %v88 = vunpack.c.l.b16 %v20
    %v89 = vunpack.c.l.b16 %v21
    %v90 = vunpack.c.l.b16 %v22
    %v91 = vunpack.c.l.b16 %v23
    %v92 = vunpack.c.l.b16 %v24
    %v93 = vunpack.c.l.b16 %v25
    %v94 = vunpack.c.l.b16 %v26
    %v95 = vunpack.c.l.b16 %v27
    %v96 = vunpack.c.l.b16 %v28
    %v97 = vunpack.c.l.b16 %v29
    %v98 = vunpack.c.l.b16 %v30
    %v99 = vunpack.c.l.b16 %v31
    %v100 = vunpack.c.l.b16 %v32
    %v101 = vunpack.c.l.b16 %v33
    %v102 = vunpack.c.l.b16 %v34
    %v103 = vunpack.c.l.b16 %v35
    %v104 = vunpack.c.l.b16 %v36
    %v105 = vunpack.c.l.b16 %v37
    %v106 = vunpack.c.l.b16 %v38
    %v107 = vunpack.c.l.b16 %v39
    %v108 = vunpack.c.l.b16 %v40
    %v109 = vunpack.c.l.b16 %v41
    %v110 = vunpack.c.l.b16 %v42
    %v111 = vunpack.c.l.b16 %v43
    %v112 = vunpack.c.l.b16 %v44
    %v113 = vpack.c.b16 %v82, %v81
    %v114 = vpack.c.b16 %v84, %v83
    %v115 = vpack.c.b16 %v86, %v85
    %v116 = vpack.c.b16 %v88, %v87
    %v117 = vpack.c.b16 %v90, %v89
    %v118 = vpack.c.b16 %v92, %v91
    %v119 = vpack.c.b16 %v94, %v93
    %v120 = vpack.c.b16 %v96, %v95
    %v121 = vpack.c.b16 %v98, %v97
    %v122 = vpack.c.b16 %v100, %v99
    %v123 = vpack.c.b16 %v102, %v101
    %v124 = vpack.c.b16 %v104, %v103
    %v125 = vpack.c.b16 %v106, %v105
    %v126 = vpack.c.b16 %v108, %v107
    %v127 = vpack.c.b16 %v110, %v109
    %v128 = vpack.c.b16 %v112, %v111
    %v133 = vunpack.c.l.b16 %v45
    %v134 = vunpack.c.h.b16 %v45
    %v135 = vunpack.c.l.b16 %v46
    %v136 = vunpack.c.h.b16 %v46
    %v137 = vunpack.c.l.b16 %v47
    %v138 = vunpack.c.h.b16 %v47
    %v139 = vunpack.c.l.b16 %v48
    %v140 = vunpack.c.h.b16 %v48
    %v141 = vpack.c.b16 %v135, %v133
    %v142 = vpack.c.b16 %v136, %v134
    %v143 = vpack.c.b16 %v139, %v137
    %v144 = vpack.c.b16 %v140, %v138
    %vm149 = vcmask 261120
    %v151 = vsel %vm149, %v113, 0
    %v154 = vsel %vm149, %v114, 0
    %v157 = vsel %vm149, %v115, 0
    %v160 = vsel %vm149, %v116, 0
    %v163 = vsel %vm149, %v117, 0
    %v166 = vsel %vm149, %v118, 0
    %v169 = vsel %vm149, %v119, 0
    %v172 = vsel %vm149, %v120, 0
    %v175 = vsel %vm149, %v121, 0
    %v178 = vsel %vm149, %v122, 0
    %v181 = vsel %vm149, %v123, 0
    %v184 = vsel %vm149, %v124, 0
    %v187 = vsel %vm149, %v125, 0
    %v190 = vsel %vm149, %v126, 0
    %v193 = vsel %vm149, %v127, 0
    %v196 = vsel %vm149, %v128, 0
    %198 = vmatprep.subr.bf16.mxu0 0
    %199 = vmatpush1.bf16.msra.mxu0 0
    %200 = vmatprep.subr.bf16.mxu0 0
    %201 = vmatpush1.bf16.msra.mxu0 0
    %202 = vmatprep.subr.bf16.mxu0 0
    %203 = vmatpush1.bf16.msra.mxu0 0
    %204 = vmatprep.subr.bf16.mxu0 0
    %205 = vmatpush1.bf16.msra.mxu0 0
    %206 = vmatprep.subr.bf16.mxu0 0
    %207 = vmatpush1.bf16.msra.mxu0 0
    %208 = vmatprep.subr.bf16.mxu0 0
    %209 = vmatpush1.bf16.msra.mxu0 0
    %210 = vmatprep.subr.bf16.mxu0 %v144
    %211 = vmatpush1.bf16.msra.mxu0 %v143
    %212 = vmatprep.subr.bf16.mxu0 %v142
    %213 = vmatpush1.bf16.msra.mxu0 %v141
    %214 = vmatprep.subr.bf16.mxu0 0
    %215 = vmatpush2.bf16.msra.mxu0 0
    %216 = vmatprep.subr.bf16.mxu0 0
    %217 = vmatpush2.bf16.msra.mxu0 0
    %218 = vmatprep.subr.bf16.mxu0 0
    %219 = vmatpush2.bf16.msra.mxu0 0
    %220 = vmatprep.subr.bf16.mxu0 0
    %221 = vmatpush2.bf16.msra.mxu0 0
    %222 = vmatprep.subr.bf16.mxu0 0
    %223 = vmatpush2.bf16.msra.mxu0 0
    %224 = vmatprep.subr.bf16.mxu0 0
    %225 = vmatpush2.bf16.msra.mxu0 0
    %226 = vmatprep.subr.bf16.mxu0 0
    %227 = vmatpush2.bf16.msra.mxu0 0
    %228 = vmatprep.subr.bf16.mxu0 0
    %229 = vmatpush2.bf16.msra.mxu0 0
    %230 = vmatprep.mubr.bf16.mxu0 0
    %231 = vmatmul.mubr.bf16.gmra.mxu0 %v151
    %v232 = vpop.f32.mrf.mxu0
    %v233 = vadd.f32 0.0, %v232
    %v234 = vpop.f32.mrf.mxu0
    %v235 = vadd.f32 0.0, %v234
    %v236 = vpop.f32.mrf.mxu0
    %v237 = vadd.f32 0.0, %v236
    %v238 = vpop.f32.mrf.mxu0
    %v239 = vadd.f32 0.0, %v238
    %240 = vmatprep.mubr.bf16.mxu0 0
    %241 = vmatmul.mubr.bf16.gmra.mxu0 %v154
    %v242 = vpop.f32.mrf.mxu0
    %v243 = vadd.f32 0.0, %v242
    %v244 = vpop.f32.mrf.mxu0
    %v245 = vadd.f32 0.0, %v244
    %v246 = vpop.f32.mrf.mxu0
    %v247 = vadd.f32 0.0, %v246
    %v248 = vpop.f32.mrf.mxu0
    %v249 = vadd.f32 0.0, %v248
    %250 = vmatprep.mubr.bf16.mxu0 0
    %251 = vmatmul.mubr.bf16.gmra.mxu0 %v157
    %v252 = vpop.f32.mrf.mxu0
    %v253 = vadd.f32 0.0, %v252
    %v254 = vpop.f32.mrf.mxu0
    %v255 = vadd.f32 0.0, %v254
    %v256 = vpop.f32.mrf.mxu0
    %v257 = vadd.f32 0.0, %v256
    %v258 = vpop.f32.mrf.mxu0
    %v259 = vadd.f32 0.0, %v258
    %260 = vmatprep.mubr.bf16.mxu0 0
    %261 = vmatmul.mubr.bf16.gmra.mxu0 %v160
    %v262 = vpop.f32.mrf.mxu0
    %v263 = vadd.f32 0.0, %v262
    %v264 = vpop.f32.mrf.mxu0
    %v265 = vadd.f32 0.0, %v264
    %v266 = vpop.f32.mrf.mxu0
    %v267 = vadd.f32 0.0, %v266
    %v268 = vpop.f32.mrf.mxu0
    %v269 = vadd.f32 0.0, %v268
    %270 = vmatprep.mubr.bf16.mxu0 0
    %271 = vmatmul.mubr.bf16.gmra.mxu0 %v163
    %v272 = vpop.f32.mrf.mxu0
    %v273 = vadd.f32 0.0, %v272
    %v274 = vpop.f32.mrf.mxu0
    %v275 = vadd.f32 0.0, %v274
    %v276 = vpop.f32.mrf.mxu0
    %v277 = vadd.f32 0.0, %v276
    %v278 = vpop.f32.mrf.mxu0
    %v279 = vadd.f32 0.0, %v278
    %280 = vmatprep.mubr.bf16.mxu0 0
    %281 = vmatmul.mubr.bf16.gmra.mxu0 %v166
    %v282 = vpop.f32.mrf.mxu0
    %v283 = vadd.f32 0.0, %v282
    %v284 = vpop.f32.mrf.mxu0
    %v285 = vadd.f32 0.0, %v284
    %v286 = vpop.f32.mrf.mxu0
    %v287 = vadd.f32 0.0, %v286
    %v288 = vpop.f32.mrf.mxu0
    %v289 = vadd.f32 0.0, %v288
    %290 = vmatprep.mubr.bf16.mxu0 0
    %291 = vmatmul.mubr.bf16.gmra.mxu0 %v169
    %v292 = vpop.f32.mrf.mxu0
    %v293 = vadd.f32 0.0, %v292
    %v294 = vpop.f32.mrf.mxu0
    %v295 = vadd.f32 0.0, %v294
    %v296 = vpop.f32.mrf.mxu0
    %v297 = vadd.f32 0.0, %v296
    %v298 = vpop.f32.mrf.mxu0
    %v299 = vadd.f32 0.0, %v298
    %300 = vmatprep.mubr.bf16.mxu0 0
    %301 = vmatmul.mubr.bf16.gmra.mxu0 %v172
    %v302 = vpop.f32.mrf.mxu0
    %v303 = vadd.f32 0.0, %v302
    %v304 = vpop.f32.mrf.mxu0
    %v305 = vadd.f32 0.0, %v304
    %v306 = vpop.f32.mrf.mxu0
    %v307 = vadd.f32 0.0, %v306
    %v308 = vpop.f32.mrf.mxu0
    %v309 = vadd.f32 0.0, %v308
    %310 = vmatprep.mubr.bf16.mxu0 0
    %311 = vmatmul.mubr.bf16.gmra.mxu0 %v175
    %v312 = vpop.f32.mrf.mxu0
    %v313 = vadd.f32 0.0, %v312
    %v314 = vpop.f32.mrf.mxu0
    %v315 = vadd.f32 0.0, %v314
    %v316 = vpop.f32.mrf.mxu0
    %v317 = vadd.f32 0.0, %v316
    %v318 = vpop.f32.mrf.mxu0
    %v319 = vadd.f32 0.0, %v318
    %320 = vmatprep.mubr.bf16.mxu0 0
    %321 = vmatmul.mubr.bf16.gmra.mxu0 %v178
    %v322 = vpop.f32.mrf.mxu0
    %v323 = vadd.f32 0.0, %v322
    %v324 = vpop.f32.mrf.mxu0
    %v325 = vadd.f32 0.0, %v324
    %v326 = vpop.f32.mrf.mxu0
    %v327 = vadd.f32 0.0, %v326
    %v328 = vpop.f32.mrf.mxu0
    %v329 = vadd.f32 0.0, %v328
    %330 = vmatprep.mubr.bf16.mxu0 0
    %331 = vmatmul.mubr.bf16.gmra.mxu0 %v181
    %v332 = vpop.f32.mrf.mxu0
    %v333 = vadd.f32 0.0, %v332
    %v334 = vpop.f32.mrf.mxu0
    %v335 = vadd.f32 0.0, %v334
    %v336 = vpop.f32.mrf.mxu0
    %v337 = vadd.f32 0.0, %v336
    %v338 = vpop.f32.mrf.mxu0
    %v339 = vadd.f32 0.0, %v338
    %340 = vmatprep.mubr.bf16.mxu0 0
    %341 = vmatmul.mubr.bf16.gmra.mxu0 %v184
    %v342 = vpop.f32.mrf.mxu0
    %v343 = vadd.f32 0.0, %v342
    %v344 = vpop.f32.mrf.mxu0
    %v345 = vadd.f32 0.0, %v344
    %v346 = vpop.f32.mrf.mxu0
    %v347 = vadd.f32 0.0, %v346
    %v348 = vpop.f32.mrf.mxu0
    %v349 = vadd.f32 0.0, %v348
    %350 = vmatprep.mubr.bf16.mxu0 0
    %351 = vmatmul.mubr.bf16.gmra.mxu0 %v187
    %v352 = vpop.f32.mrf.mxu0
    %v353 = vadd.f32 0.0, %v352
    %v354 = vpop.f32.mrf.mxu0
    %v355 = vadd.f32 0.0, %v354
    %v356 = vpop.f32.mrf.mxu0
    %v357 = vadd.f32 0.0, %v356
    %v358 = vpop.f32.mrf.mxu0
    %v359 = vadd.f32 0.0, %v358
    %360 = vmatprep.mubr.bf16.mxu0 0
    %361 = vmatmul.mubr.bf16.gmra.mxu0 %v190
    %v362 = vpop.f32.mrf.mxu0
    %v363 = vadd.f32 0.0, %v362
    %v364 = vpop.f32.mrf.mxu0
    %v365 = vadd.f32 0.0, %v364
    %v366 = vpop.f32.mrf.mxu0
    %v367 = vadd.f32 0.0, %v366
    %v368 = vpop.f32.mrf.mxu0
    %v369 = vadd.f32 0.0, %v368
    %370 = vmatprep.mubr.bf16.mxu0 0
    %371 = vmatmul.mubr.bf16.gmra.mxu0 %v193
    %v372 = vpop.f32.mrf.mxu0
    %v373 = vadd.f32 0.0, %v372
    %v374 = vpop.f32.mrf.mxu0
    %v375 = vadd.f32 0.0, %v374
    %v376 = vpop.f32.mrf.mxu0
    %v377 = vadd.f32 0.0, %v376
    %v378 = vpop.f32.mrf.mxu0
    %v379 = vadd.f32 0.0, %v378
    %380 = vmatprep.mubr.bf16.mxu0 0
    %381 = vmatmul.mubr.bf16.gmra.mxu0 %v196
    %v382 = vpop.f32.mrf.mxu0
    %v383 = vadd.f32 0.0, %v382
    %v384 = vpop.f32.mrf.mxu0
    %v385 = vadd.f32 0.0, %v384
    %v386 = vpop.f32.mrf.mxu0
    %v387 = vadd.f32 0.0, %v386
    %v388 = vpop.f32.mrf.mxu0
    %v389 = vadd.f32 0.0, %v388
    %390 = vdwg.mxu0
    %p391 = scmp.eq.s32.totalorder 0, 0
    // Predicated region
    $region10: #{tpu_custom_call.1} parent=1 // pred_check
      %p392 = pneg %p391
    $region11: #{tpu_custom_call.1} parent=1 // pred_check_branch
      %394 = sbr.rel (%p392) target = $region13
    $region12: #{tpu_custom_call.1} parent=1 // pred_region
      %395 = vst [vmem:[#allocation2] sm:$0xff] %v233
      %396 = vst [vmem:[#allocation2 + $0x8] sm:$0xff] %v235
      %397 = vst [vmem:[#allocation2 + $0x10] sm:$0xff] %v237
      %398 = vst [vmem:[#allocation2 + $0x18] sm:$0xff] %v239
      %399 = vst [vmem:[#allocation2 + $0x20] sm:$0xff] %v243
      %400 = vst [vmem:[#allocation2 + $0x28] sm:$0xff] %v245
      %401 = vst [vmem:[#allocation2 + $0x30] sm:$0xff] %v247
      %402 = vst [vmem:[#allocation2 + $0x38] sm:$0xff] %v249
      %403 = vst [vmem:[#allocation2 + $0x40] sm:$0xff] %v253
      %404 = vst [vmem:[#allocation2 + $0x48] sm:$0xff] %v255
      %405 = vst [vmem:[#allocation2 + $0x50] sm:$0xff] %v257
      %406 = vst [vmem:[#allocation2 + $0x58] sm:$0xff] %v259
      %407 = vst [vmem:[#allocation2 + $0x60] sm:$0xff] %v263
      %408 = vst [vmem:[#allocation2 + $0x68] sm:$0xff] %v265
      %409 = vst [vmem:[#allocation2 + $0x70] sm:$0xff] %v267
      %410 = vst [vmem:[#allocation2 + $0x78] sm:$0xff] %v269
      %411 = vst [vmem:[#allocation2 + $0x80] sm:$0xff] %v273
      %412 = vst [vmem:[#allocation2 + $0x88] sm:$0xff] %v275
      %413 = vst [vmem:[#allocation2 + $0x90] sm:$0xff] %v277
      %414 = vst [vmem:[#allocation2 + $0x98] sm:$0xff] %v279
      %415 = vst [vmem:[#allocation2 + $0xa0] sm:$0xff] %v283
      %416 = vst [vmem:[#allocation2 + $0xa8] sm:$0xff] %v285
      %417 = vst [vmem:[#allocation2 + $0xb0] sm:$0xff] %v287
      %418 = vst [vmem:[#allocation2 + $0xb8] sm:$0xff] %v289
      %419 = vst [vmem:[#allocation2 + $0xc0] sm:$0xff] %v293
      %420 = vst [vmem:[#allocation2 + $0xc8] sm:$0xff] %v295
      %421 = vst [vmem:[#allocation2 + $0xd0] sm:$0xff] %v297
      %422 = vst [vmem:[#allocation2 + $0xd8] sm:$0xff] %v299
      %423 = vst [vmem:[#allocation2 + $0xe0] sm:$0xff] %v303
      %424 = vst [vmem:[#allocation2 + $0xe8] sm:$0xff] %v305
      %425 = vst [vmem:[#allocation2 + $0xf0] sm:$0xff] %v307
      %426 = vst [vmem:[#allocation2 + $0xf8] sm:$0xff] %v309
      %427 = vst [vmem:[#allocation2 + $0x100] sm:$0xff] %v313
      %428 = vst [vmem:[#allocation2 + $0x108] sm:$0xff] %v315
      %429 = vst [vmem:[#allocation2 + $0x110] sm:$0xff] %v317
      %430 = vst [vmem:[#allocation2 + $0x118] sm:$0xff] %v319
      %431 = vst [vmem:[#allocation2 + $0x120] sm:$0xff] %v323
      %432 = vst [vmem:[#allocation2 + $0x128] sm:$0xff] %v325
      %433 = vst [vmem:[#allocation2 + $0x130] sm:$0xff] %v327
      %434 = vst [vmem:[#allocation2 + $0x138] sm:$0xff] %v329
      %435 = vst [vmem:[#allocation2 + $0x140] sm:$0xff] %v333
      %436 = vst [vmem:[#allocation2 + $0x148] sm:$0xff] %v335
      %437 = vst [vmem:[#allocation2 + $0x150] sm:$0xff] %v337
      %438 = vst [vmem:[#allocation2 + $0x158] sm:$0xff] %v339
      %439 = vst [vmem:[#allocation2 + $0x160] sm:$0xff] %v343
      %440 = vst [vmem:[#allocation2 + $0x168] sm:$0xff] %v345
      %441 = vst [vmem:[#allocation2 + $0x170] sm:$0xff] %v347
      %442 = vst [vmem:[#allocation2 + $0x178] sm:$0xff] %v349
      %443 = vst [vmem:[#allocation2 + $0x180] sm:$0xff] %v353
      %444 = vst [vmem:[#allocation2 + $0x188] sm:$0xff] %v355
      %445 = vst [vmem:[#allocation2 + $0x190] sm:$0xff] %v357
      %446 = vst [vmem:[#allocation2 + $0x198] sm:$0xff] %v359
      %447 = vst [vmem:[#allocation2 + $0x1a0] sm:$0xff] %v363
      %448 = vst [vmem:[#allocation2 + $0x1a8] sm:$0xff] %v365
      %449 = vst [vmem:[#allocation2 + $0x1b0] sm:$0xff] %v367
      %450 = vst [vmem:[#allocation2 + $0x1b8] sm:$0xff] %v369
      %451 = vst [vmem:[#allocation2 + $0x1c0] sm:$0xff] %v373
      %452 = vst [vmem:[#allocation2 + $0x1c8] sm:$0xff] %v375
      %453 = vst [vmem:[#allocation2 + $0x1d0] sm:$0xff] %v377
      %454 = vst [vmem:[#allocation2 + $0x1d8] sm:$0xff] %v379
      %455 = vst [vmem:[#allocation2 + $0x1e0] sm:$0xff] %v383
      %456 = vst [vmem:[#allocation2 + $0x1e8] sm:$0xff] %v385
      %457 = vst [vmem:[#allocation2 + $0x1f0] sm:$0xff] %v387
      %458 = vst [vmem:[#allocation2 + $0x1f8] sm:$0xff] %v389
    $region13: #{tpu_custom_call.1} parent=1 // pred_fallthru
      _
    %p459 = scmp.gt.s32.totalorder 0, 0
    // Predicated region
    $region14: #{tpu_custom_call.1} parent=1 // pred_check
      %p460 = pneg %p459
    $region15: #{tpu_custom_call.1} parent=1 // pred_check_branch
      %462 = sbr.rel (%p460) target = $region17
    $region16: #{tpu_custom_call.1} parent=1 // pred_region
      %v463 = vld [vmem:[#allocation2] sm:$0xff]
      %v464 = vld [vmem:[#allocation2 + $0x8] sm:$0xff]
      %v465 = vld [vmem:[#allocation2 + $0x10] sm:$0xff]
      %v466 = vld [vmem:[#allocation2 + $0x18] sm:$0xff]
      %v467 = vld [vmem:[#allocation2 + $0x20] sm:$0xff]
      %v468 = vld [vmem:[#allocation2 + $0x28] sm:$0xff]
      %v469 = vld [vmem:[#allocation2 + $0x30] sm:$0xff]
      %v470 = vld [vmem:[#allocation2 + $0x38] sm:$0xff]
      %v471 = vld [vmem:[#allocation2 + $0x40] sm:$0xff]
      %v472 = vld [vmem:[#allocation2 + $0x48] sm:$0xff]
      %v473 = vld [vmem:[#allocation2 + $0x50] sm:$0xff]
      %v474 = vld [vmem:[#allocation2 + $0x58] sm:$0xff]
      %v475 = vld [vmem:[#allocation2 + $0x60] sm:$0xff]
      %v476 = vld [vmem:[#allocation2 + $0x68] sm:$0xff]
      %v477 = vld [vmem:[#allocation2 + $0x70] sm:$0xff]
      %v478 = vld [vmem:[#allocation2 + $0x78] sm:$0xff]
      %v479 = vld [vmem:[#allocation2 + $0x80] sm:$0xff]
      %v480 = vld [vmem:[#allocation2 + $0x88] sm:$0xff]
      %v481 = vld [vmem:[#allocation2 + $0x90] sm:$0xff]
      %v482 = vld [vmem:[#allocation2 + $0x98] sm:$0xff]
      %v483 = vld [vmem:[#allocation2 + $0xa0] sm:$0xff]
      %v484 = vld [vmem:[#allocation2 + $0xa8] sm:$0xff]
      %v485 = vld [vmem:[#allocation2 + $0xb0] sm:$0xff]
      %v486 = vld [vmem:[#allocation2 + $0xb8] sm:$0xff]
      %v487 = vld [vmem:[#allocation2 + $0xc0] sm:$0xff]
      %v488 = vld [vmem:[#allocation2 + $0xc8] sm:$0xff]
      %v489 = vld [vmem:[#allocation2 + $0xd0] sm:$0xff]
      %v490 = vld [vmem:[#allocation2 + $0xd8] sm:$0xff]
      %v491 = vld [vmem:[#allocation2 + $0xe0] sm:$0xff]
      %v492 = vld [vmem:[#allocation2 + $0xe8] sm:$0xff]
      %v493 = vld [vmem:[#allocation2 + $0xf0] sm:$0xff]
      %v494 = vld [vmem:[#allocation2 + $0xf8] sm:$0xff]
      %v495 = vld [vmem:[#allocation2 + $0x100] sm:$0xff]
      %v496 = vld [vmem:[#allocation2 + $0x108] sm:$0xff]
      %v497 = vld [vmem:[#allocation2 + $0x110] sm:$0xff]
      %v498 = vld [vmem:[#allocation2 + $0x118] sm:$0xff]
      %v499 = vld [vmem:[#allocation2 + $0x120] sm:$0xff]
      %v500 = vld [vmem:[#allocation2 + $0x128] sm:$0xff]
      %v501 = vld [vmem:[#allocation2 + $0x130] sm:$0xff]
      %v502 = vld [vmem:[#allocation2 + $0x138] sm:$0xff]
      %v503 = vld [vmem:[#allocation2 + $0x140] sm:$0xff]
      %v504 = vld [vmem:[#allocation2 + $0x148] sm:$0xff]
      %v505 = vld [vmem:[#allocation2 + $0x150] sm:$0xff]
      %v506 = vld [vmem:[#allocation2 + $0x158] sm:$0xff]
      %v507 = vld [vmem:[#allocation2 + $0x160] sm:$0xff]
      %v508 = vld [vmem:[#allocation2 + $0x168] sm:$0xff]
      %v509 = vld [vmem:[#allocation2 + $0x170] sm:$0xff]
      %v510 = vld [vmem:[#allocation2 + $0x178] sm:$0xff]
      %v511 = vld [vmem:[#allocation2 + $0x180] sm:$0xff]
      %v512 = vld [vmem:[#allocation2 + $0x188] sm:$0xff]
      %v513 = vld [vmem:[#allocation2 + $0x190] sm:$0xff]
      %v514 = vld [vmem:[#allocation2 + $0x198] sm:$0xff]
      %v515 = vld [vmem:[#allocation2 + $0x1a0] sm:$0xff]
      %v516 = vld [vmem:[#allocation2 + $0x1a8] sm:$0xff]
      %v517 = vld [vmem:[#allocation2 + $0x1b0] sm:$0xff]
      %v518 = vld [vmem:[#allocation2 + $0x1b8] sm:$0xff]
      %v519 = vld [vmem:[#allocation2 + $0x1c0] sm:$0xff]
      %v520 = vld [vmem:[#allocation2 + $0x1c8] sm:$0xff]
      %v521 = vld [vmem:[#allocation2 + $0x1d0] sm:$0xff]
      %v522 = vld [vmem:[#allocation2 + $0x1d8] sm:$0xff]
      %v523 = vld [vmem:[#allocation2 + $0x1e0] sm:$0xff]
      %v524 = vld [vmem:[#allocation2 + $0x1e8] sm:$0xff]
      %v525 = vld [vmem:[#allocation2 + $0x1f0] sm:$0xff]
      %v526 = vld [vmem:[#allocation2 + $0x1f8] sm:$0xff]
      %v527 = vadd.f32 %v463, %v233
      %v528 = vadd.f32 %v464, %v235
      %v529 = vadd.f32 %v465, %v237
      %v530 = vadd.f32 %v466, %v239
      %v531 = vadd.f32 %v467, %v243
      %v532 = vadd.f32 %v468, %v245
      %v533 = vadd.f32 %v469, %v247
      %v534 = vadd.f32 %v470, %v249
      %v535 = vadd.f32 %v471, %v253
      %v536 = vadd.f32 %v472, %v255
      %v537 = vadd.f32 %v473, %v257
      %v538 = vadd.f32 %v474, %v259
      %v539 = vadd.f32 %v475, %v263
      %v540 = vadd.f32 %v476, %v265
      %v541 = vadd.f32 %v477, %v267
      %v542 = vadd.f32 %v478, %v269
      %v543 = vadd.f32 %v479, %v273
      %v544 = vadd.f32 %v480, %v275
      %v545 = vadd.f32 %v481, %v277
      %v546 = vadd.f32 %v482, %v279
      %v547 = vadd.f32 %v483, %v283
      %v548 = vadd.f32 %v484, %v285
      %v549 = vadd.f32 %v485, %v287
      %v550 = vadd.f32 %v486, %v289
      %v551 = vadd.f32 %v487, %v293
      %v552 = vadd.f32 %v488, %v295
      %v553 = vadd.f32 %v489, %v297
      %v554 = vadd.f32 %v490, %v299
      %v555 = vadd.f32 %v491, %v303
      %v556 = vadd.f32 %v492, %v305
      %v557 = vadd.f32 %v493, %v307
      %v558 = vadd.f32 %v494, %v309
      %v559 = vadd.f32 %v495, %v313
      %v560 = vadd.f32 %v496, %v315
      %v561 = vadd.f32 %v497, %v317
      %v562 = vadd.f32 %v498, %v319
      %v563 = vadd.f32 %v499, %v323
      %v564 = vadd.f32 %v500, %v325
      %v565 = vadd.f32 %v501, %v327
      %v566 = vadd.f32 %v502, %v329
      %v567 = vadd.f32 %v503, %v333
      %v568 = vadd.f32 %v504, %v335
      %v569 = vadd.f32 %v505, %v337
      %v570 = vadd.f32 %v506, %v339
      %v571 = vadd.f32 %v507, %v343
      %v572 = vadd.f32 %v508, %v345
      %v573 = vadd.f32 %v509, %v347
      %v574 = vadd.f32 %v510, %v349
      %v575 = vadd.f32 %v511, %v353
      %v576 = vadd.f32 %v512, %v355
      %v577 = vadd.f32 %v513, %v357
      %v578 = vadd.f32 %v514, %v359
      %v579 = vadd.f32 %v515, %v363
      %v580 = vadd.f32 %v516, %v365
      %v581 = vadd.f32 %v517, %v367
      %v582 = vadd.f32 %v518, %v369
      %v583 = vadd.f32 %v519, %v373
      %v584 = vadd.f32 %v520, %v375
      %v585 = vadd.f32 %v521, %v377
      %v586 = vadd.f32 %v522, %v379
      %v587 = vadd.f32 %v523, %v383
      %v588 = vadd.f32 %v524, %v385
      %v589 = vadd.f32 %v525, %v387
      %v590 = vadd.f32 %v526, %v389
      %591 = vst [vmem:[#allocation2] sm:$0xff] %v527
      %592 = vst [vmem:[#allocation2 + $0x8] sm:$0xff] %v528
      %593 = vst [vmem:[#allocation2 + $0x10] sm:$0xff] %v529
      %594 = vst [vmem:[#allocation2 + $0x18] sm:$0xff] %v530
      %595 = vst [vmem:[#allocation2 + $0x20] sm:$0xff] %v531
      %596 = vst [vmem:[#allocation2 + $0x28] sm:$0xff] %v532
      %597 = vst [vmem:[#allocation2 + $0x30] sm:$0xff] %v533
      %598 = vst [vmem:[#allocation2 + $0x38] sm:$0xff] %v534
      %599 = vst [vmem:[#allocation2 + $0x40] sm:$0xff] %v535
      %600 = vst [vmem:[#allocation2 + $0x48] sm:$0xff] %v536
      %601 = vst [vmem:[#allocation2 + $0x50] sm:$0xff] %v537
      %602 = vst [vmem:[#allocation2 + $0x58] sm:$0xff] %v538
      %603 = vst [vmem:[#allocation2 + $0x60] sm:$0xff] %v539
      %604 = vst [vmem:[#allocation2 + $0x68] sm:$0xff] %v540
      %605 = vst [vmem:[#allocation2 + $0x70] sm:$0xff] %v541
      %606 = vst [vmem:[#allocation2 + $0x78] sm:$0xff] %v542
      %607 = vst [vmem:[#allocation2 + $0x80] sm:$0xff] %v543
      %608 = vst [vmem:[#allocation2 + $0x88] sm:$0xff] %v544
      %609 = vst [vmem:[#allocation2 + $0x90] sm:$0xff] %v545
      %610 = vst [vmem:[#allocation2 + $0x98] sm:$0xff] %v546
      %611 = vst [vmem:[#allocation2 + $0xa0] sm:$0xff] %v547
      %612 = vst [vmem:[#allocation2 + $0xa8] sm:$0xff] %v548
      %613 = vst [vmem:[#allocation2 + $0xb0] sm:$0xff] %v549
      %614 = vst [vmem:[#allocation2 + $0xb8] sm:$0xff] %v550
      %615 = vst [vmem:[#allocation2 + $0xc0] sm:$0xff] %v551
      %616 = vst [vmem:[#allocation2 + $0xc8] sm:$0xff] %v552
      %617 = vst [vmem:[#allocation2 + $0xd0] sm:$0xff] %v553
      %618 = vst [vmem:[#allocation2 + $0xd8] sm:$0xff] %v554
      %619 = vst [vmem:[#allocation2 + $0xe0] sm:$0xff] %v555
      %620 = vst [vmem:[#allocation2 + $0xe8] sm:$0xff] %v556
      %621 = vst [vmem:[#allocation2 + $0xf0] sm:$0xff] %v557
      %622 = vst [vmem:[#allocation2 + $0xf8] sm:$0xff] %v558
      %623 = vst [vmem:[#allocation2 + $0x100] sm:$0xff] %v559
      %624 = vst [vmem:[#allocation2 + $0x108] sm:$0xff] %v560
      %625 = vst [vmem:[#allocation2 + $0x110] sm:$0xff] %v561
      %626 = vst [vmem:[#allocation2 + $0x118] sm:$0xff] %v562
      %627 = vst [vmem:[#allocation2 + $0x120] sm:$0xff] %v563
      %628 = vst [vmem:[#allocation2 + $0x128] sm:$0xff] %v564
      %629 = vst [vmem:[#allocation2 + $0x130] sm:$0xff] %v565
      %630 = vst [vmem:[#allocation2 + $0x138] sm:$0xff] %v566
      %631 = vst [vmem:[#allocation2 + $0x140] sm:$0xff] %v567
      %632 = vst [vmem:[#allocation2 + $0x148] sm:$0xff] %v568
      %633 = vst [vmem:[#allocation2 + $0x150] sm:$0xff] %v569
      %634 = vst [vmem:[#allocation2 + $0x158] sm:$0xff] %v570
      %635 = vst [vmem:[#allocation2 + $0x160] sm:$0xff] %v571
      %636 = vst [vmem:[#allocation2 + $0x168] sm:$0xff] %v572
      %637 = vst [vmem:[#allocation2 + $0x170] sm:$0xff] %v573
      %638 = vst [vmem:[#allocation2 + $0x178] sm:$0xff] %v574
      %639 = vst [vmem:[#allocation2 + $0x180] sm:$0xff] %v575
      %640 = vst [vmem:[#allocation2 + $0x188] sm:$0xff] %v576
      %641 = vst [vmem:[#allocation2 + $0x190] sm:$0xff] %v577
      %642 = vst [vmem:[#allocation2 + $0x198] sm:$0xff] %v578
      %643 = vst [vmem:[#allocation2 + $0x1a0] sm:$0xff] %v579
      %644 = vst [vmem:[#allocation2 + $0x1a8] sm:$0xff] %v580
      %645 = vst [vmem:[#allocation2 + $0x1b0] sm:$0xff] %v581
      %646 = vst [vmem:[#allocation2 + $0x1b8] sm:$0xff] %v582
      %647 = vst [vmem:[#allocation2 + $0x1c0] sm:$0xff] %v583
      %648 = vst [vmem:[#allocation2 + $0x1c8] sm:$0xff] %v584
      %649 = vst [vmem:[#allocation2 + $0x1d0] sm:$0xff] %v585
      %650 = vst [vmem:[#allocation2 + $0x1d8] sm:$0xff] %v586
      %651 = vst [vmem:[#allocation2 + $0x1e0] sm:$0xff] %v587
      %652 = vst [vmem:[#allocation2 + $0x1e8] sm:$0xff] %v588
      %653 = vst [vmem:[#allocation2 + $0x1f0] sm:$0xff] %v589
      %654 = vst [vmem:[#allocation2 + $0x1f8] sm:$0xff] %v590
    $region17: #{tpu_custom_call.1} parent=1 // pred_fallthru
      _
    // Predicated region
    $region18: #{tpu_custom_call.1} parent=1 // pred_check
      _
    $region19: #{tpu_custom_call.1} parent=1 // pred_check_branch
      %656 = sbr.rel (0) target = $region21
    $region20: #{tpu_custom_call.1} parent=1 // pred_region
      %s658 = ssub.s32 8192, 8192
      %659 = vsyncadd [#allocation3], %s658
      %s660 = sshll.u32 [#allocation2], 4
      %s661 = int_to_ptr.vmem [resolvable:$true] %s660
      %666 = dma.vmem_to_hbm [thread:$0]  %s661, 8192, %s2, [#allocation3], 256, 256, 16
    $region21: #{tpu_custom_call.1} parent=1 // pred_fallthru
      _
    // Predicated region
    $region22: #{tpu_custom_call.1} parent=1 // pred_check
      _
    $region23: #{tpu_custom_call.1} parent=1 // pred_check_branch
      %668 = sbr.rel (0) target = $region25
    $region24: #{tpu_custom_call.1} parent=1 // pred_region
      %669 = dma.done [#allocation3], 8192
    $region25: #{tpu_custom_call.1} parent=1 // pred_fallthru
      _
    %670 = vsyncpa [#allocation3], 1

</llo_original>
